<compile_context>
chip_gen: v7x
topology: tpu7x:2x2x1
jax: 0.10.0
libtpu: 0.0.40
codegen_flags: <defaults>
</compile_context>

<pallas_src>
import functools

import jax
import jax.numpy as jnp
from jax.experimental import pallas as pl
from jax.experimental.pallas import tpu as pltpu


# ---------------------------------------------------------------------------
# Kernel 1: fused  (x @ w) * scale + bias  [-> ReLU]   (conv1, 1x1)
# ---------------------------------------------------------------------------
def _mm_bn_kernel(x_ref, w_ref, s_ref, b_ref, o_ref, *, relu):
    y = jnp.dot(x_ref[...], w_ref[...], preferred_element_type=jnp.float32)
    y = y * s_ref[...] + b_ref[...]
    if relu:
        y = jnp.maximum(y, 0.0)
    o_ref[...] = y.astype(o_ref.dtype)


def fused_matmul_bn(x2d, w, scale, bias, *, relu, tm=256, out_dtype=jnp.bfloat16):
    """y = act((x2d @ w) * scale + bias); rows tiled & padded to tm multiples."""
    M, K = x2d.shape
    Cout = w.shape[1]
    tm = min(tm, max(8, ((M + 7) // 8) * 8))
    grid_m = pl.cdiv(M, tm)
    Mp = grid_m * tm
    if Mp != M:
        x2d = jnp.pad(x2d, ((0, Mp - M), (0, 0)))

    out = pl.pallas_call(
        functools.partial(_mm_bn_kernel, relu=relu),
        out_shape=jax.ShapeDtypeStruct((Mp, Cout), out_dtype),
        grid=(grid_m,),
        in_specs=[
            pl.BlockSpec((tm, K), lambda i: (i, 0)),
            pl.BlockSpec((K, Cout), lambda i: (0, 0)),   # grid-invariant weight
            pl.BlockSpec((1, Cout), lambda i: (0, 0)),
            pl.BlockSpec((1, Cout), lambda i: (0, 0)),
        ],
        out_specs=pl.BlockSpec((tm, Cout), lambda i: (i, 0)),
        compiler_params=pltpu.CompilerParams(
            dimension_semantics=("parallel",),
            vmem_limit_bytes=32 * 1024 * 1024),
    )(x2d.astype(jnp.bfloat16), w.astype(jnp.bfloat16), scale, bias)
    return out[:M] if Mp != M else out


# ---------------------------------------------------------------------------
# Kernel 2: conv2 (3x3 as im2col matmul) + BN + ReLU -> conv3 (1x1) + BN
#           + shortcut (1x1 conv + BN | identity) + add + final ReLU, fused.
# ---------------------------------------------------------------------------
def _tail_kernel(xc_ref, w2_ref, s2_ref, b2_ref, w3_ref, s3_ref, b3_ref,
                 xs_ref, *rest, identity):
    if identity:
        (o_ref,) = rest
    else:
        ws_ref, ss_ref, bs_ref, o_ref = rest

    # conv2: 3x3/stride conv as one wide matmul over the im2col rows.
    h2 = jnp.dot(xc_ref[...], w2_ref[...], preferred_element_type=jnp.float32)
    h2 = jnp.maximum(h2 * s2_ref[...] + b2_ref[...], 0.0)

    # conv3 (1x1) + BN on the VMEM-resident h2.
    y = jnp.dot(h2.astype(jnp.bfloat16), w3_ref[...],
                preferred_element_type=jnp.float32)
    y = y * s3_ref[...] + b3_ref[...]

    # shortcut branch fused in (no separate kernel, no HBM round trip).
    if identity:
        y = y + xs_ref[...].astype(jnp.float32)
    else:
        sc = jnp.dot(xs_ref[...], ws_ref[...], preferred_element_type=jnp.float32)
        y = y + sc * ss_ref[...] + bs_ref[...]

    o_ref[...] = jnp.maximum(y, 0.0).astype(o_ref.dtype)


def fused_bottleneck_tail(x2col, xs, w2, s2, b2, w3, s3, b3, shortcut,
                          *, tm=256, out_dtype=jnp.float32):
    M, K2 = x2col.shape
    C2 = w2.shape[1]
    Cexp = w3.shape[1]
    Cin = xs.shape[1]
    identity = shortcut is None

    tm = min(tm, max(8, ((M + 7) // 8) * 8))
    grid_m = pl.cdiv(M, tm)
    Mp = grid_m * tm
    if Mp != M:
        x2col = jnp.pad(x2col, ((0, Mp - M), (0, 0)))
        xs = jnp.pad(xs, ((0, Mp - M), (0, 0)))

    in_specs = [
        pl.BlockSpec((tm, K2), lambda i: (i, 0)),
        pl.BlockSpec((K2, C2), lambda i: (0, 0)),
        pl.BlockSpec((1, C2), lambda i: (0, 0)),
        pl.BlockSpec((1, C2), lambda i: (0, 0)),
        pl.BlockSpec((C2, Cexp), lambda i: (0, 0)),
        pl.BlockSpec((1, Cexp), lambda i: (0, 0)),
        pl.BlockSpec((1, Cexp), lambda i: (0, 0)),
        pl.BlockSpec((tm, Cin), lambda i: (i, 0)),
    ]
    args = [x2col, w2, s2, b2, w3, s3, b3, xs]
    if not identity:
        ws, ssc, bs = shortcut
        in_specs += [
            pl.BlockSpec((Cin, Cexp), lambda i: (0, 0)),
            pl.BlockSpec((1, Cexp), lambda i: (0, 0)),
            pl.BlockSpec((1, Cexp), lambda i: (0, 0)),
        ]
        args += [ws, ssc, bs]

    out = pl.pallas_call(
        functools.partial(_tail_kernel, identity=identity),
        out_shape=jax.ShapeDtypeStruct((Mp, Cexp), out_dtype),
        grid=(grid_m,),
        in_specs=in_specs,
        out_specs=pl.BlockSpec((tm, Cexp), lambda i: (i, 0)),
        compiler_params=pltpu.CompilerParams(
            dimension_semantics=("parallel",),
            vmem_limit_bytes=64 * 1024 * 1024),
    )(*args)
    return out[:M] if Mp != M else out


# ---------------------------------------------------------------------------
# Glue: im2col (wrapper-side XLA data movement), parameter folding
# ---------------------------------------------------------------------------
def im2col_3x3(h_nhwc, stride):
    """3x3 / stride / pad=1 patch extraction -> (N*Ho*Wo, 9*C), tap-major."""
    N, H, W, C = h_nhwc.shape
    s = stride
    Ho = (H - 1) // s + 1
    Wo = (W - 1) // s + 1
    hp = jnp.pad(h_nhwc, ((0, 0), (1, 1), (1, 1), (0, 0)))
    cols = []
    for dh in range(3):
        for dw in range(3):
            cols.append(hp[:, dh:dh + (Ho - 1) * s + 1:s,
                            dw:dw + (Wo - 1) * s + 1:s, :])
    xc = jnp.concatenate(cols, axis=-1)          # (N, Ho, Wo, 9*C)
    return xc.reshape(N * Ho * Wo, 9 * C), Ho, Wo


def fold_bn(gamma, beta, mean, var, eps=1e-5):
    scale = gamma / jnp.sqrt(var + eps)
    bias = beta - mean * scale
    return scale[None, :], bias[None, :]


def conv1x1_weight(w_oihw):
    # (Cout, Cin, 1, 1) -> (Cin, Cout)
    return jnp.transpose(w_oihw[:, :, 0, 0], (1, 0))


def conv3x3_weight(w_oihw):
    # (Cout, Cin, 3, 3) -> (9*Cin, Cout); row k = (dh*3 + dw)*Cin + cin
    cout, cin, kh, kw = w_oihw.shape
    return jnp.transpose(w_oihw, (2, 3, 1, 0)).reshape(kh * kw * cin, cout)


def init_bottleneck_params(key, in_channels, out_channels, stride, expansion=4):
    exp_c = out_channels * expansion
    keys = jax.random.split(key, 16)

    def bn(kg, kb, km, kv, c):
        gamma = 1.0 + 0.1 * jax.random.normal(kg, (c,), jnp.float32)
        beta = 0.1 * jax.random.normal(kb, (c,), jnp.float32)
        mean = 0.1 * jax.random.normal(km, (c,), jnp.float32)
        var = jnp.abs(jax.random.normal(kv, (c,), jnp.float32)) + 0.5
        return fold_bn(gamma, beta, mean, var)

    p = {}
    p["w1"] = conv1x1_weight(
        0.1 * jax.random.normal(keys[0], (out_channels, in_channels, 1, 1), jnp.float32))
    p["s1"], p["b1"] = bn(keys[1], keys[2], keys[3], keys[4], out_channels)
    p["w2"] = conv3x3_weight(
        0.1 * jax.random.normal(keys[5], (out_channels, out_channels, 3, 3), jnp.float32))
    p["s2"], p["b2"] = bn(keys[6], keys[7], keys[8], keys[9], out_channels)
    p["w3"] = conv1x1_weight(
        0.1 * jax.random.normal(keys[10], (exp_c, out_channels, 1, 1), jnp.float32))
    p["s3"], p["b3"] = bn(keys[11], keys[12], keys[13], keys[14], exp_c)
    if stride != 1 or in_channels != exp_c:
        sk = jax.random.split(keys[15], 5)
        p["ws"] = conv1x1_weight(
            0.1 * jax.random.normal(sk[0], (exp_c, in_channels, 1, 1), jnp.float32))
        p["ss"], p["bs"] = bn(sk[1], sk[2], sk[3], sk[4], exp_c)
    return p


# ---------------------------------------------------------------------------
# Forward pass (input/output are NCHW, like the PyTorch module)
# ---------------------------------------------------------------------------
def bottleneck_forward(x_nchw, params, stride, expansion=4):
    x = jnp.transpose(x_nchw, (0, 2, 3, 1))  # NCHW -> NHWC
    N, H, W, Cin = x.shape
    exp_c = params["w3"].shape[1]

    # conv1 (1x1) + BN + ReLU (bf16 activations out)
    h1 = fused_matmul_bn(x.reshape(N * H * W, Cin),
                         params["w1"], params["s1"], params["b1"], relu=True)
    h1 = h1.reshape(N, H, W, -1)

    # 3x3 im2col built in the wrapper (plain XLA data movement, bf16 slab)
    x2col, Ho, Wo = im2col_3x3(h1, stride)

    identity = (stride == 1 and Cin == exp_c)
    xs = x[:, ::stride, ::stride, :].reshape(N * Ho * Wo, Cin)
    if identity:
        shortcut = None
        xs = xs.astype(jnp.float32)
    else:
        xs = xs.astype(jnp.bfloat16)
        shortcut = (params["ws"].astype(jnp.bfloat16), params["ss"], params["bs"])

    # conv2 + BN + ReLU + conv3 + BN + shortcut + add + ReLU, one fused kernel
    out = fused_bottleneck_tail(
        x2col, xs,
        params["w2"].astype(jnp.bfloat16), params["s2"], params["b2"],
        params["w3"].astype(jnp.bfloat16), params["s3"], params["b3"],
        shortcut)

    out = out.reshape(N, Ho, Wo, exp_c)
    return jnp.transpose(out, (0, 3, 1, 2))  # NHWC -> NCHW


# Pure-JAX f32 reference (same folded-BN math) for a sanity check.
def bottleneck_reference(x_nchw, params, stride):
    x = jnp.transpose(x_nchw, (0, 2, 3, 1)).astype(jnp.float32)
    N, H, W, Cin = x.shape
    exp_c = params["w3"].shape[1]
    h1 = jnp.maximum((x.reshape(-1, Cin) @ params["w1"]) * params["s1"]
                     + params["b1"], 0.0).reshape(N, H, W, -1)
    xc, Ho, Wo = im2col_3x3(h1, stride)
    h2 = jnp.maximum((xc @ params["w2"]) * params["s2"] + params["b2"], 0.0)
    y = (h2 @ params["w3"]) * params["s3"] + params["b3"]
    xs = x[:, ::stride, ::stride, :].reshape(-1, Cin)
    if "ws" in params:
        y = y + (xs @ params["ws"]) * params["ss"] + params["bs"]
    else:
        y = y + xs
    out = jnp.maximum(y, 0.0).reshape(N, Ho, Wo, exp_c)
    return jnp.transpose(out, (0, 3, 1, 2))


if __name__ == "__main__":
    key = jax.random.PRNGKey(0)
    k_x, k_p = jax.random.split(key)

    in_channels, out_channels, stride = 4, 4, 2  # expansion 4 -> 16 out channels
    x = jax.random.normal(k_x, (2, in_channels, 16, 16), jnp.float32)  # NCHW
    params = init_bottleneck_params(k_p, in_channels, out_channels, stride)

    y = bottleneck_forward(x, params, stride)
    jax.block_until_ready(y)

    assert y.shape == (2, out_channels * 4, 16 // stride, 16 // stride), y.shape
    assert bool(jnp.all(y >= 0.0))  # final ReLU

    y_ref = bottleneck_reference(x, params, stride)
    max_err = float(jnp.max(jnp.abs(y - y_ref)))
    assert max_err < 0.1, f"max abs error vs f32 reference: {max_err}"

    print("KERNEL_OK")
</pallas_src>

<mosaic_0001>
module attributes {stable_mosaic.version = 11 : i64} {
  func.func @_mm_bn_kernel(%arg0: i32, %arg1: memref<256x4xbf16, #tpu.memory_space<vmem>>, %arg2: memref<4x4xbf16, #tpu.memory_space<vmem>>, %arg3: memref<1x4xf32, #tpu.memory_space<vmem>>, %arg4: memref<1x4xf32, #tpu.memory_space<vmem>>, %arg5: memref<256x4xbf16, #tpu.memory_space<vmem>>) attributes {dimension_semantics = [#tpu.dimension_semantics<parallel>], iteration_bounds = array<i64: 2>, scalar_prefetch = 0 : i64, scratch_operands = 0 : i64, tpu.core_type = #tpu.core_type<tc>, window_params = [{transform_indices = @transform_0, window_bounds = array<i64: 256, 4>}, {pipeline_mode = #tpu.pipeline_mode<synchronous>, transform_indices = @transform_1, window_bounds = array<i64: 4, 4>}, {pipeline_mode = #tpu.pipeline_mode<synchronous>, transform_indices = @transform_2, window_bounds = array<i64: 1, 4>}, {pipeline_mode = #tpu.pipeline_mode<synchronous>, transform_indices = @transform_3, window_bounds = array<i64: 1, 4>}, {transform_indices = @transform_4, window_bounds = array<i64: 256, 4>}]} {
    %c0 = arith.constant 0 : index
    %c0_0 = arith.constant 0 : index
    %0 = vector.load %arg1[%c0, %c0_0] : memref<256x4xbf16, #tpu.memory_space<vmem>>, vector<256x4xbf16>
    %c0_1 = arith.constant 0 : index
    %c0_2 = arith.constant 0 : index
    %1 = vector.load %arg2[%c0_1, %c0_2] : memref<4x4xbf16, #tpu.memory_space<vmem>>, vector<4x4xbf16>
    %cst = arith.constant dense<0.000000e+00> : vector<256x4xf32>
    %2 = tpu.matmul %0, %1, %cst {dimension_numbers = #tpu.dot_dimension_numbers<[1], [0], [0], [1], [0, 0, 1, 1], [], []>} : vector<256x4xbf16>, vector<4x4xbf16>, vector<256x4xf32> -> vector<256x4xf32>
    %c0_3 = arith.constant 0 : index
    %c0_4 = arith.constant 0 : index
    %3 = vector.load %arg3[%c0_3, %c0_4] : memref<1x4xf32, #tpu.memory_space<vmem>>, vector<1x4xf32>
    %4 = vector.broadcast %3 : vector<1x4xf32> to vector<256x4xf32>
    %5 = arith.mulf %2, %4 : vector<256x4xf32>
    %c0_5 = arith.constant 0 : index
    %c0_6 = arith.constant 0 : index
    %6 = vector.load %arg4[%c0_5, %c0_6] : memref<1x4xf32, #tpu.memory_space<vmem>>, vector<1x4xf32>
    %7 = vector.broadcast %6 : vector<1x4xf32> to vector<256x4xf32>
    %8 = arith.addf %5, %7 : vector<256x4xf32>
    %cst_7 = arith.constant 0.000000e+00 : f32
    %9 = vector.broadcast %cst_7 : f32 to vector<256x4xf32>
    %10 = arith.maximumf %8, %9 : vector<256x4xf32>
    %11 = arith.truncf %10 : vector<256x4xf32> to vector<256x4xbf16>
    %c0_8 = arith.constant 0 : index
    %c0_9 = arith.constant 0 : index
    %12 = vector.load %arg5[%c0_8, %c0_9] : memref<256x4xbf16, #tpu.memory_space<vmem>>, vector<256x4xbf16>
    tpu.vector_store %arg5[%c0_8, %c0_9], %11 {strides = array<i32>} : memref<256x4xbf16, #tpu.memory_space<vmem>>, vector<256x4xbf16>,
    return
  }
  func.func @transform_0(%arg0: i32) -> (i32, i32) {
    %c0_i32 = arith.constant 0 : i32
    %c0_i32_0 = arith.constant 0 : i32
    return %arg0, %c0_i32 : i32, i32
  }
  func.func @transform_1(%arg0: i32) -> (i32, i32) {
    %c0_i32 = arith.constant 0 : i32
    %c0_i32_0 = arith.constant 0 : i32
    %c0_i32_1 = arith.constant 0 : i32
    return %c0_i32, %c0_i32_0 : i32, i32
  }
  func.func @transform_2(%arg0: i32) -> (i32, i32) {
    %c0_i32 = arith.constant 0 : i32
    %c0_i32_0 = arith.constant 0 : i32
    %c0_i32_1 = arith.constant 0 : i32
    return %c0_i32, %c0_i32_0 : i32, i32
  }
  func.func @transform_3(%arg0: i32) -> (i32, i32) {
    %c0_i32 = arith.constant 0 : i32
    %c0_i32_0 = arith.constant 0 : i32
    %c0_i32_1 = arith.constant 0 : i32
    return %c0_i32, %c0_i32_0 : i32, i32
  }
  func.func @transform_4(%arg0: i32) -> (i32, i32) {
    %c0_i32 = arith.constant 0 : i32
    %c0_i32_0 = arith.constant 0 : i32
    return %arg0, %c0_i32 : i32, i32
  }
}

</mosaic_0001>

<llo_original>
// kernel: tpu_custom_call.1
$region0: #{tpu_custom_call.1}
  #allocation0 [shape = 'u32[]', space=smem, size = 0x4, offset = 0x4, fixed_abs, tag = 'smem constant byte address 0x4 - core index']
  #allocation1 [shape = 'u32[144,128]{1,0:T(1,128)}', space=vmem, size = 0x12000, scoped, tag = 'internal scratch']
  %s0 = inlined_call_operand.vmem [shape: bf16[512,4], index: 0, kind: input, shape index: {}]
  %s1 = inlined_call_operand.vmem [shape: bf16[4,4], index: 1, kind: input, shape index: {}]
  %s2 = inlined_call_operand.vmem [shape: f32[1,4], index: 2, kind: input, shape index: {}]
  %s3 = inlined_call_operand.vmem [shape: f32[1,4], index: 3, kind: input, shape index: {}]
  %s4 = inlined_call_operand.vmem [shape: bf16[512,4], index: 4, kind: output, shape index: {}]
  %s5 = sld [smem:[#allocation0]]
  $region49: #{tpu_custom_call.1} parent=0
    _
  %s7 = ssub.s32 1, %s5
  %s8 = scalar_select 0, %s7, %s5
  loop: start=0, step=1, limit=4
  $region2: #{tpu_custom_call.1} parent=0 // loop_pre_header
    _
  $region3: #{tpu_custom_call.1} parent=0 // loop_header
    %s10 = sphi 0, %s14
    %p11 = scmp.ge.s32.totalorder %s10, 4
    %s20 = sphi 0, %s22
    %s23 = sphi 0, %s20
    %s24 = sphi 0, %s23
    %s40 = sphi 0, %s24
    %s44 = sphi 0, %s44
    %s46 = sphi 0, %s44
    %s47 = sphi 0, %s46
    %s61 = sphi 0, %s47
    %s65 = sphi 0, %s65
    %s67 = sphi 0, %s65
    %s68 = sphi 0, %s67
    %s82 = sphi 0, %s68
    %s86 = sphi 0, %s86
    %s88 = sphi 0, %s86
    %s89 = sphi 0, %s88
    %s103 = sphi 0, %s89
    %s109 = sphi 0, %s111
    %s112 = sphi 0, %s109
    %s113 = sphi 0, %s112
    %s129 = sphi 0, %s113
  $region4: #{tpu_custom_call.1} parent=0 // loop_header_branch
    %13 = sbr.rel (%p11) target = $region8
  $region5: #{tpu_custom_call.1} parent=0 // loop_body
    %s15 = ssub.s32 %s10, 1
    %s16 = ssub.s32 %s10, 2
    %s17 = sadd.s32 %s10, 1
    %s18 = ssub.s32 %s10, %s17
    %p19 = scmp.eq.s32.totalorder %s18, 0
    %s21 = sadd.s32 %s20, 1
    %s22 = scalar_select %p19, %s20, %s21
    %p25 = pneg %p19
    %p26 = scmp.eq.s32.totalorder %s10, 1
    %p27 = por %p25, %p26
    %p28 = scmp.ne.s32.totalorder %s20, %s23
    %p29 = scmp.eq.s32.totalorder %s10, 0
    %p30 = por %p28, %p29
    %p31 = scmp.ne.s32.totalorder %s20, %s23
    %p32 = scmp.eq.s32.totalorder %s15, 1
    %p33 = por %p31, %p32
    %p34 = scmp.ne.s32.totalorder %s23, %s24
    %p35 = scmp.eq.s32.totalorder %s15, 0
    %p36 = por %p34, %p35
    %p37 = scmp.ne.s32.totalorder %s23, %s24
    %p38 = scmp.eq.s32.totalorder %s16, 1
    %p39 = por %p37, %p38
    %p41 = scmp.ne.s32.totalorder %s24, %s40
    %p42 = scmp.eq.s32.totalorder %s16, 0
    %p43 = por %p41, %p42
    %s45 = sadd.s32 %s44, 1
    %p48 = scmp.eq.s32.totalorder %s10, 1
    %p49 = scmp.ne.s32.totalorder %s44, %s46
    %p50 = scmp.eq.s32.totalorder %s10, 0
    %p51 = por %p49, %p50
    %p52 = scmp.ne.s32.totalorder %s44, %s46
    %p53 = scmp.eq.s32.totalorder %s15, 1
    %p54 = por %p52, %p53
    %p55 = scmp.ne.s32.totalorder %s46, %s47
    %p56 = scmp.eq.s32.totalorder %s15, 0
    %p57 = por %p55, %p56
    %p58 = scmp.ne.s32.totalorder %s46, %s47
    %p59 = scmp.eq.s32.totalorder %s16, 1
    %p60 = por %p58, %p59
    %p62 = scmp.ne.s32.totalorder %s47, %s61
    %p63 = scmp.eq.s32.totalorder %s16, 0
    %p64 = por %p62, %p63
    %s66 = sadd.s32 %s65, 1
    %p69 = scmp.eq.s32.totalorder %s10, 1
    %p70 = scmp.ne.s32.totalorder %s65, %s67
    %p71 = scmp.eq.s32.totalorder %s10, 0
    %p72 = por %p70, %p71
    %p73 = scmp.ne.s32.totalorder %s65, %s67
    %p74 = scmp.eq.s32.totalorder %s15, 1
    %p75 = por %p73, %p74
    %p76 = scmp.ne.s32.totalorder %s67, %s68
    %p77 = scmp.eq.s32.totalorder %s15, 0
    %p78 = por %p76, %p77
    %p79 = scmp.ne.s32.totalorder %s67, %s68
    %p80 = scmp.eq.s32.totalorder %s16, 1
    %p81 = por %p79, %p80
    %p83 = scmp.ne.s32.totalorder %s68, %s82
    %p84 = scmp.eq.s32.totalorder %s16, 0
    %p85 = por %p83, %p84
    %s87 = sadd.s32 %s86, 1
    %p90 = scmp.eq.s32.totalorder %s10, 1
    %p91 = scmp.ne.s32.totalorder %s86, %s88
    %p92 = scmp.eq.s32.totalorder %s10, 0
    %p93 = por %p91, %p92
    %p94 = scmp.ne.s32.totalorder %s86, %s88
    %p95 = scmp.eq.s32.totalorder %s15, 1
    %p96 = por %p94, %p95
    %p97 = scmp.ne.s32.totalorder %s88, %s89
    %p98 = scmp.eq.s32.totalorder %s15, 0
    %p99 = por %p97, %p98
    %p100 = scmp.ne.s32.totalorder %s88, %s89
    %p101 = scmp.eq.s32.totalorder %s16, 1
    %p102 = por %p100, %p101
    %p104 = scmp.ne.s32.totalorder %s89, %s103
    %p105 = scmp.eq.s32.totalorder %s16, 0
    %p106 = por %p104, %p105
    %s107 = ssub.s32 %s10, %s17
    %p108 = scmp.eq.s32.totalorder %s107, 0
    %s110 = sadd.s32 %s109, 1
    %s111 = scalar_select %p108, %s109, %s110
    %p114 = pneg %p108
    %p115 = scmp.eq.s32.totalorder %s10, 1
    %p116 = por %p114, %p115
    %p117 = scmp.ne.s32.totalorder %s109, %s112
    %p118 = scmp.eq.s32.totalorder %s10, 0
    %p119 = por %p117, %p118
    %p120 = scmp.ne.s32.totalorder %s109, %s112
    %p121 = scmp.eq.s32.totalorder %s15, 1
    %p122 = por %p120, %p121
    %p123 = scmp.ne.s32.totalorder %s112, %s113
    %p124 = scmp.eq.s32.totalorder %s15, 0
    %p125 = por %p123, %p124
    %p126 = scmp.ne.s32.totalorder %s112, %s113
    %p127 = scmp.eq.s32.totalorder %s16, 1
    %p128 = por %p126, %p127
    %p130 = scmp.ne.s32.totalorder %s113, %s129
    %p131 = scmp.eq.s32.totalorder %s16, 0
    %p132 = por %p130, %p131
    %p133 = scmp.le.s32.totalorder 1, %s10
    %p134 = scmp.lt.s32.totalorder %s10, 3
    %p135 = pnand %p133, %p134
    %p136 = pneg %p135
    // Predicated region
    $region9: #{tpu_custom_call.1} parent=5 // pred_check
      _
    $region10: #{tpu_custom_call.1} parent=5 // pred_check_branch
      %138 = sbr.rel (%p135) target = $region12
    $region11: #{tpu_custom_call.1} parent=5 // pred_region
      %s139 = ssub.s32 %s10, 1
      // Predicated region
      $region13: #{tpu_custom_call.1} parent=11 // pred_check
        %p140 = pneg %p57
      $region14: #{tpu_custom_call.1} parent=11 // pred_check_branch
        %142 = sbr.rel (%p140) target = $region16
      $region15: #{tpu_custom_call.1} parent=11 // pred_region
        _
      $region16: #{tpu_custom_call.1} parent=11 // pred_fallthru
        _
      // Predicated region
      $region17: #{tpu_custom_call.1} parent=11 // pred_check
        %p143 = pneg %p78
      $region18: #{tpu_custom_call.1} parent=11 // pred_check_branch
        %145 = sbr.rel (%p143) target = $region20
      $region19: #{tpu_custom_call.1} parent=11 // pred_region
        _
      $region20: #{tpu_custom_call.1} parent=11 // pred_fallthru
        _
      // Predicated region
      $region21: #{tpu_custom_call.1} parent=11 // pred_check
        %p146 = pneg %p99
      $region22: #{tpu_custom_call.1} parent=11 // pred_check_branch
        %148 = sbr.rel (%p146) target = $region24
      $region23: #{tpu_custom_call.1} parent=11 // pred_region
        _
      $region24: #{tpu_custom_call.1} parent=11 // pred_fallthru
        _
    $region12: #{tpu_custom_call.1} parent=5 // pred_fallthru
      _
    %p149 = scmp.lt.s32.totalorder %s10, 2
    // Predicated region
    $region25: #{tpu_custom_call.1} parent=5 // pred_check
      %p150 = pneg %p149
    $region26: #{tpu_custom_call.1} parent=5 // pred_check_branch
      %152 = sbr.rel (%p150) target = $region28
    $region27: #{tpu_custom_call.1} parent=5 // pred_region
      // Predicated region
      $region29: #{tpu_custom_call.1} parent=27 // pred_check
        %p153 = pneg %p30
      $region30: #{tpu_custom_call.1} parent=27 // pred_check_branch
        %155 = sbr.rel (%p153) target = $region32
      $region31: #{tpu_custom_call.1} parent=27 // pred_region
        %s156 = smul.u32 32, %s10
        %p157 = scmp.lt.s32.totalorder %s156, 63
        %s158 = scalar_select %p157, %s156, 63
        %s159 = smul.addr %s158, 4
        %s160 = scalar_lea.vmem %s0, %s159
        %s161 = smul.u32 32, %s10
      $region32: #{tpu_custom_call.1} parent=27 // pred_fallthru
        _
    $region28: #{tpu_custom_call.1} parent=5 // pred_fallthru
      _
    %p162 = scmp.le.s32.totalorder 1, %s10
    %p163 = scmp.lt.s32.totalorder %s10, 3
    %p164 = pnand %p162, %p163
    %p165 = pneg %p164
    // Predicated region
    $region33: #{tpu_custom_call.1} parent=5 // pred_check
      _
    $region34: #{tpu_custom_call.1} parent=5 // pred_check_branch
      %167 = sbr.rel (%p164) target = $region36
    $region35: #{tpu_custom_call.1} parent=5 // pred_region
      %s168 = ssub.s32 %s10, 1
      %s169 = smul.u32 32, %s15
      %p170 = scmp.lt.s32.totalorder %s169, 63
      %s171 = scalar_select %p170, %s169, 63
      %s172 = smul.addr %s171, 4
      %s173 = scalar_lea.vmem %s0, %s172
      %p174 = pneg %p36
      %p175 = pneg %p33
      %p176 = pneg %p57
      %p177 = pneg %p54
      %p178 = pneg %p78
      %p179 = pneg %p75
      %p180 = pneg %p99
      %p181 = pneg %p96
      %p182 = pneg %p125
      %p183 = pneg %p122
      %s184 = smul.u32 32, %s15
      %p185 = scmp.lt.s32.totalorder %s184, 63
      %s186 = scalar_select %p185, %s184, 63
      %s187 = smul.addr %s186, 4
      %s188 = scalar_lea.vmem %s4, %s187
      %s189 = smul.u32 32, %s15
      %p190 = scmp.lt.s32.totalorder %s189, 63
      %s191 = scalar_select %p190, %s189, 63
      %s192 = smul.addr %s191, 4
      %s193 = scalar_lea.vmem %s0, %s192
      %s194 = smul.u32 32, %s15
      %s195 = smul.u32 32, %s15
      %p196 = scmp.lt.s32.totalorder %s195, 63
      %s197 = scalar_select %p196, %s195, 63
      %s198 = smul.addr %s197, 4
      %s199 = scalar_lea.vmem %s4, %s198
      %s200 = smul.u32 32, %s15
      %v202 = vld [vmem:[%s193] sm:$0xf]
      %v203 = vld [vmem:[%s193 + $0x4] sm:$0xf]
      %v204 = vld [vmem:[%s193 + $0x8] sm:$0xf]
      %v205 = vld [vmem:[%s193 + $0xc] sm:$0xf]
      %v206 = vld [vmem:[%s193 + $0x10] sm:$0xf]
      %v207 = vld [vmem:[%s193 + $0x14] sm:$0xf]
      %v208 = vld [vmem:[%s193 + $0x18] sm:$0xf]
      %v209 = vld [vmem:[%s193 + $0x1c] sm:$0xf]
      %v210 = vld [vmem:[%s193 + $0x20] sm:$0xf]
      %v211 = vld [vmem:[%s193 + $0x24] sm:$0xf]
      %v212 = vld [vmem:[%s193 + $0x28] sm:$0xf]
      %v213 = vld [vmem:[%s193 + $0x2c] sm:$0xf]
      %v214 = vld [vmem:[%s193 + $0x30] sm:$0xf]
      %v215 = vld [vmem:[%s193 + $0x34] sm:$0xf]
      %v216 = vld [vmem:[%s193 + $0x38] sm:$0xf]
      %v217 = vld [vmem:[%s193 + $0x3c] sm:$0xf]
      %v218 = vld [vmem:[%s193 + $0x40] sm:$0xf]
      %v219 = vld [vmem:[%s193 + $0x44] sm:$0xf]
      %v220 = vld [vmem:[%s193 + $0x48] sm:$0xf]
      %v221 = vld [vmem:[%s193 + $0x4c] sm:$0xf]
      %v222 = vld [vmem:[%s193 + $0x50] sm:$0xf]
      %v223 = vld [vmem:[%s193 + $0x54] sm:$0xf]
      %v224 = vld [vmem:[%s193 + $0x58] sm:$0xf]
      %v225 = vld [vmem:[%s193 + $0x5c] sm:$0xf]
      %v226 = vld [vmem:[%s193 + $0x60] sm:$0xf]
      %v227 = vld [vmem:[%s193 + $0x64] sm:$0xf]
      %v228 = vld [vmem:[%s193 + $0x68] sm:$0xf]
      %v229 = vld [vmem:[%s193 + $0x6c] sm:$0xf]
      %v230 = vld [vmem:[%s193 + $0x70] sm:$0xf]
      %v231 = vld [vmem:[%s193 + $0x74] sm:$0xf]
      %v232 = vld [vmem:[%s193 + $0x78] sm:$0xf]
      %v233 = vld [vmem:[%s193 + $0x7c] sm:$0xf]
      %v234 = vld [vmem:[%s1] sm:$0x3]
      %v267 = vunpack.c.l.b16 %v202
      %v268 = vunpack.c.l.b16 %v203
      %v269 = vunpack.c.l.b16 %v204
      %v270 = vunpack.c.l.b16 %v205
      %v271 = vunpack.c.l.b16 %v206
      %v272 = vunpack.c.l.b16 %v207
      %v273 = vunpack.c.l.b16 %v208
      %v274 = vunpack.c.l.b16 %v209
      %v275 = vunpack.c.l.b16 %v210
      %v276 = vunpack.c.l.b16 %v211
      %v277 = vunpack.c.l.b16 %v212
      %v278 = vunpack.c.l.b16 %v213
      %v279 = vunpack.c.l.b16 %v214
      %v280 = vunpack.c.l.b16 %v215
      %v281 = vunpack.c.l.b16 %v216
      %v282 = vunpack.c.l.b16 %v217
      %v283 = vunpack.c.l.b16 %v218
      %v284 = vunpack.c.l.b16 %v219
      %v285 = vunpack.c.l.b16 %v220
      %v286 = vunpack.c.l.b16 %v221
      %v287 = vunpack.c.l.b16 %v222
      %v288 = vunpack.c.l.b16 %v223
      %v289 = vunpack.c.l.b16 %v224
      %v290 = vunpack.c.l.b16 %v225
      %v291 = vunpack.c.l.b16 %v226
      %v292 = vunpack.c.l.b16 %v227
      %v293 = vunpack.c.l.b16 %v228
      %v294 = vunpack.c.l.b16 %v229
      %v295 = vunpack.c.l.b16 %v230
      %v296 = vunpack.c.l.b16 %v231
      %v297 = vunpack.c.l.b16 %v232
      %v298 = vunpack.c.l.b16 %v233
      %v299 = vpack.c.b16 %v268, %v267
      %v300 = vpack.c.b16 %v270, %v269
      %v301 = vpack.c.b16 %v272, %v271
      %v302 = vpack.c.b16 %v274, %v273
      %v303 = vpack.c.b16 %v276, %v275
      %v304 = vpack.c.b16 %v278, %v277
      %v305 = vpack.c.b16 %v280, %v279
      %v306 = vpack.c.b16 %v282, %v281
      %v307 = vpack.c.b16 %v284, %v283
      %v308 = vpack.c.b16 %v286, %v285
      %v309 = vpack.c.b16 %v288, %v287
      %v310 = vpack.c.b16 %v290, %v289
      %v311 = vpack.c.b16 %v292, %v291
      %v312 = vpack.c.b16 %v294, %v293
      %v313 = vpack.c.b16 %v296, %v295
      %v314 = vpack.c.b16 %v298, %v297
      %vm315 = vcmask 31744
      %v317 = vsel %vm315, %v299, 0
      %v320 = vsel %vm315, %v300, 0
      %v323 = vsel %vm315, %v301, 0
      %v326 = vsel %vm315, %v302, 0
      %v329 = vsel %vm315, %v303, 0
      %v332 = vsel %vm315, %v304, 0
      %v335 = vsel %vm315, %v305, 0
      %v338 = vsel %vm315, %v306, 0
      %v341 = vsel %vm315, %v307, 0
      %v344 = vsel %vm315, %v308, 0
      %v347 = vsel %vm315, %v309, 0
      %v350 = vsel %vm315, %v310, 0
      %v353 = vsel %vm315, %v311, 0
      %v356 = vsel %vm315, %v312, 0
      %v359 = vsel %vm315, %v313, 0
      %v362 = vsel %vm315, %v314, 0
      %vm364 = vcmask 1041408
      %v366 = vsel %vm364, %v234, 0
      %368 = vmatprep.subr.bf16.mxu0 0
      %369 = vmatpush1.bf16.msra.mxu0 %v366
      %370 = vmatprep.subr.bf16.mxu0 0
      %371 = vmatpush1.bf16.msra.mxu0 0
      %372 = vmatprep.subr.bf16.mxu0 0
      %373 = vmatpush1.bf16.msra.mxu0 0
      %374 = vmatprep.subr.bf16.mxu0 0
      %375 = vmatpush1.bf16.msra.mxu0 0
      %376 = vmatprep.subr.bf16.mxu0 0
      %377 = vmatpush1.bf16.msra.mxu0 0
      %378 = vmatprep.subr.bf16.mxu0 0
      %379 = vmatpush1.bf16.msra.mxu0 0
      %380 = vmatprep.subr.bf16.mxu0 0
      %381 = vmatpush1.bf16.msra.mxu0 0
      %382 = vmatprep.subr.bf16.mxu0 0
      %383 = vmatpush1.bf16.msra.mxu0 0
      %384 = vmatprep.subr.bf16.mxu0 0
      %385 = vmatpush1.bf16.msra.mxu0 0
      %386 = vmatprep.subr.bf16.mxu0 0
      %387 = vmatpush1.bf16.msra.mxu0 0
      %388 = vmatprep.subr.bf16.mxu0 0
      %389 = vmatpush1.bf16.msra.mxu0 0
      %390 = vmatprep.subr.bf16.mxu0 0
      %391 = vmatpush1.bf16.msra.mxu0 0
      %392 = vmatprep.subr.bf16.mxu0 0
      %393 = vmatpush1.bf16.msra.mxu0 0
      %394 = vmatprep.subr.bf16.mxu0 0
      %395 = vmatpush1.bf16.msra.mxu0 0
      %396 = vmatprep.subr.bf16.mxu0 0
      %397 = vmatpush1.bf16.msra.mxu0 0
      %398 = vmatprep.subr.bf16.mxu0 0
      %399 = vmatpush1.bf16.msra.mxu0 0
      %400 = vmatprep.mubr.bf16.mxu0 0
      %401 = vmatmul.mubr.bf16.gmra.mrb[0].mxu0 %v317
      %v402 = vpop.f32.mrb[0].mxu0
      %v403 = vadd.f32 0.0, %v402
      %v404 = vpop.f32.mrb[0].mxu0
      %v405 = vpop.f32.mrb[0].mxu0
      %v406 = vadd.f32 0.0, %v405
      %v407 = vpop.f32.mrb[0].mxu0
      %408 = vmatprep.mubr.bf16.mxu0 0
      %409 = vmatmul.mubr.bf16.gmra.mrb[0].mxu0 %v320
      %v410 = vpop.f32.mrb[0].mxu0
      %v411 = vadd.f32 0.0, %v410
      %v412 = vpop.f32.mrb[0].mxu0
      %v413 = vpop.f32.mrb[0].mxu0
      %v414 = vadd.f32 0.0, %v413
      %v415 = vpop.f32.mrb[0].mxu0
      %416 = vmatprep.mubr.bf16.mxu0 0
      %417 = vmatmul.mubr.bf16.gmra.mrb[0].mxu0 %v323
      %v418 = vpop.f32.mrb[0].mxu0
      %v419 = vadd.f32 0.0, %v418
      %v420 = vpop.f32.mrb[0].mxu0
      %v421 = vpop.f32.mrb[0].mxu0
      %v422 = vadd.f32 0.0, %v421
      %v423 = vpop.f32.mrb[0].mxu0
      %424 = vmatprep.mubr.bf16.mxu0 0
      %425 = vmatmul.mubr.bf16.gmra.mrb[0].mxu0 %v326
      %v426 = vpop.f32.mrb[0].mxu0
      %v427 = vadd.f32 0.0, %v426
      %v428 = vpop.f32.mrb[0].mxu0
      %v429 = vpop.f32.mrb[0].mxu0
      %v430 = vadd.f32 0.0, %v429
      %v431 = vpop.f32.mrb[0].mxu0
      %432 = vmatprep.mubr.bf16.mxu0 0
      %433 = vmatmul.mubr.bf16.gmra.mrb[0].mxu0 %v329
      %v434 = vpop.f32.mrb[0].mxu0
      %v435 = vadd.f32 0.0, %v434
      %v436 = vpop.f32.mrb[0].mxu0
      %v437 = vpop.f32.mrb[0].mxu0
      %v438 = vadd.f32 0.0, %v437
      %v439 = vpop.f32.mrb[0].mxu0
      %440 = vmatprep.mubr.bf16.mxu0 0
      %441 = vmatmul.mubr.bf16.gmra.mrb[0].mxu0 %v332
      %v442 = vpop.f32.mrb[0].mxu0
      %v443 = vadd.f32 0.0, %v442
      %v444 = vpop.f32.mrb[0].mxu0
      %v445 = vpop.f32.mrb[0].mxu0
      %v446 = vadd.f32 0.0, %v445
      %v447 = vpop.f32.mrb[0].mxu0
      %448 = vmatprep.mubr.bf16.mxu0 0
      %449 = vmatmul.mubr.bf16.gmra.mrb[0].mxu0 %v335
      %v450 = vpop.f32.mrb[0].mxu0
      %v451 = vadd.f32 0.0, %v450
      %v452 = vpop.f32.mrb[0].mxu0
      %v453 = vpop.f32.mrb[0].mxu0
      %v454 = vadd.f32 0.0, %v453
      %v455 = vpop.f32.mrb[0].mxu0
      %456 = vmatprep.mubr.bf16.mxu0 0
      %457 = vmatmul.mubr.bf16.gmra.mrb[0].mxu0 %v338
      %v458 = vpop.f32.mrb[0].mxu0
      %v459 = vadd.f32 0.0, %v458
      %v460 = vpop.f32.mrb[0].mxu0
      %v461 = vpop.f32.mrb[0].mxu0
      %v462 = vadd.f32 0.0, %v461
      %v463 = vpop.f32.mrb[0].mxu0
      %464 = vmatprep.mubr.bf16.mxu0 0
      %465 = vmatmul.mubr.bf16.gmra.mrb[0].mxu0 %v341
      %v466 = vpop.f32.mrb[0].mxu0
      %v467 = vadd.f32 0.0, %v466
      %v468 = vpop.f32.mrb[0].mxu0
      %v469 = vpop.f32.mrb[0].mxu0
      %v470 = vadd.f32 0.0, %v469
      %v471 = vpop.f32.mrb[0].mxu0
      %472 = vmatprep.mubr.bf16.mxu0 0
      %473 = vmatmul.mubr.bf16.gmra.mrb[0].mxu0 %v344
      %v474 = vpop.f32.mrb[0].mxu0
      %v475 = vadd.f32 0.0, %v474
      %v476 = vpop.f32.mrb[0].mxu0
      %v477 = vpop.f32.mrb[0].mxu0
      %v478 = vadd.f32 0.0, %v477
      %v479 = vpop.f32.mrb[0].mxu0
      %480 = vmatprep.mubr.bf16.mxu0 0
      %481 = vmatmul.mubr.bf16.gmra.mrb[0].mxu0 %v347
      %v482 = vpop.f32.mrb[0].mxu0
      %v483 = vadd.f32 0.0, %v482
      %v484 = vpop.f32.mrb[0].mxu0
      %v485 = vpop.f32.mrb[0].mxu0
      %v486 = vadd.f32 0.0, %v485
      %v487 = vpop.f32.mrb[0].mxu0
      %488 = vmatprep.mubr.bf16.mxu0 0
      %489 = vmatmul.mubr.bf16.gmra.mrb[0].mxu0 %v350
      %v490 = vpop.f32.mrb[0].mxu0
      %v491 = vadd.f32 0.0, %v490
      %v492 = vpop.f32.mrb[0].mxu0
      %v493 = vpop.f32.mrb[0].mxu0
      %v494 = vadd.f32 0.0, %v493
      %v495 = vpop.f32.mrb[0].mxu0
      %496 = vmatprep.mubr.bf16.mxu0 0
      %497 = vmatmul.mubr.bf16.gmra.mrb[0].mxu0 %v353
      %v498 = vpop.f32.mrb[0].mxu0
      %v499 = vadd.f32 0.0, %v498
      %v500 = vpop.f32.mrb[0].mxu0
      %v501 = vpop.f32.mrb[0].mxu0
      %v502 = vadd.f32 0.0, %v501
      %v503 = vpop.f32.mrb[0].mxu0
      %504 = vmatprep.mubr.bf16.mxu0 0
      %505 = vmatmul.mubr.bf16.gmra.mrb[0].mxu0 %v356
      %v506 = vpop.f32.mrb[0].mxu0
      %v507 = vadd.f32 0.0, %v506
      %v508 = vpop.f32.mrb[0].mxu0
      %v509 = vpop.f32.mrb[0].mxu0
      %v510 = vadd.f32 0.0, %v509
      %v511 = vpop.f32.mrb[0].mxu0
      %512 = vmatprep.mubr.bf16.mxu0 0
      %513 = vmatmul.mubr.bf16.gmra.mrb[0].mxu0 %v359
      %v514 = vpop.f32.mrb[0].mxu0
      %v515 = vadd.f32 0.0, %v514
      %v516 = vpop.f32.mrb[0].mxu0
      %v517 = vpop.f32.mrb[0].mxu0
      %v518 = vadd.f32 0.0, %v517
      %v519 = vpop.f32.mrb[0].mxu0
      %520 = vmatprep.mubr.bf16.mxu0 0
      %521 = vmatmul.mubr.bf16.gmra.mrb[0].mxu0 %v362
      %v522 = vpop.f32.mrb[0].mxu0
      %v523 = vadd.f32 0.0, %v522
      %v524 = vpop.f32.mrb[0].mxu0
      %v525 = vpop.f32.mrb[0].mxu0
      %v526 = vadd.f32 0.0, %v525
      %v527 = vpop.f32.mrb[0].mxu0
      %528 = vdwg.mxu0
      %v529 = vld [vmem:[%s2] sm:$0x1]
      %v531 = vlaneseq
      %v532 = vshrl.u32 %v531, 7
      %v533 = vsub.s32 0, %v532
      %v534 = vrot.slane %v529, %v533
      %v536 = vmul.f32 %v403, %v534
      %v537 = vmul.f32 %v406, %v534
      %v538 = vmul.f32 %v411, %v534
      %v539 = vmul.f32 %v414, %v534
      %v540 = vmul.f32 %v419, %v534
      %v541 = vmul.f32 %v422, %v534
      %v542 = vmul.f32 %v427, %v534
      %v543 = vmul.f32 %v430, %v534
      %v544 = vmul.f32 %v435, %v534
      %v545 = vmul.f32 %v438, %v534
      %v546 = vmul.f32 %v443, %v534
      %v547 = vmul.f32 %v446, %v534
      %v548 = vmul.f32 %v451, %v534
      %v549 = vmul.f32 %v454, %v534
      %v550 = vmul.f32 %v459, %v534
      %v551 = vmul.f32 %v462, %v534
      %v552 = vmul.f32 %v467, %v534
      %v553 = vmul.f32 %v470, %v534
      %v554 = vmul.f32 %v475, %v534
      %v555 = vmul.f32 %v478, %v534
      %v556 = vmul.f32 %v483, %v534
      %v557 = vmul.f32 %v486, %v534
      %v558 = vmul.f32 %v491, %v534
      %v559 = vmul.f32 %v494, %v534
      %v560 = vmul.f32 %v499, %v534
      %v561 = vmul.f32 %v502, %v534
      %v562 = vmul.f32 %v507, %v534
      %v563 = vmul.f32 %v510, %v534
      %v564 = vmul.f32 %v515, %v534
      %v565 = vmul.f32 %v518, %v534
      %v566 = vmul.f32 %v523, %v534
      %v567 = vmul.f32 %v526, %v534
      %v568 = vld [vmem:[%s3] sm:$0x1]
      %v570 = vlaneseq
      %v571 = vshrl.u32 %v570, 7
      %v572 = vsub.s32 0, %v571
      %v573 = vrot.slane %v568, %v572
      %v575 = vadd.f32 %v536, %v573
      %v576 = vadd.f32 %v537, %v573
      %v577 = vadd.f32 %v538, %v573
      %v578 = vadd.f32 %v539, %v573
      %v579 = vadd.f32 %v540, %v573
      %v580 = vadd.f32 %v541, %v573
      %v581 = vadd.f32 %v542, %v573
      %v582 = vadd.f32 %v543, %v573
      %v583 = vadd.f32 %v544, %v573
      %v584 = vadd.f32 %v545, %v573
      %v585 = vadd.f32 %v546, %v573
      %v586 = vadd.f32 %v547, %v573
      %v587 = vadd.f32 %v548, %v573
      %v588 = vadd.f32 %v549, %v573
      %v589 = vadd.f32 %v550, %v573
      %v590 = vadd.f32 %v551, %v573
      %v591 = vadd.f32 %v552, %v573
      %v592 = vadd.f32 %v553, %v573
      %v593 = vadd.f32 %v554, %v573
      %v594 = vadd.f32 %v555, %v573
      %v595 = vadd.f32 %v556, %v573
      %v596 = vadd.f32 %v557, %v573
      %v597 = vadd.f32 %v558, %v573
      %v598 = vadd.f32 %v559, %v573
      %v599 = vadd.f32 %v560, %v573
      %v600 = vadd.f32 %v561, %v573
      %v601 = vadd.f32 %v562, %v573
      %v602 = vadd.f32 %v563, %v573
      %v603 = vadd.f32 %v564, %v573
      %v604 = vadd.f32 %v565, %v573
      %v605 = vadd.f32 %v566, %v573
      %v606 = vadd.f32 %v567, %v573
      %v607 = vmax.f32 %v575, 0.0
      %v608 = vmax.f32 %v576, 0.0
      %v609 = vmax.f32 %v577, 0.0
      %v610 = vmax.f32 %v578, 0.0
      %v611 = vmax.f32 %v579, 0.0
      %v612 = vmax.f32 %v580, 0.0
      %v613 = vmax.f32 %v581, 0.0
      %v614 = vmax.f32 %v582, 0.0
      %v615 = vmax.f32 %v583, 0.0
      %v616 = vmax.f32 %v584, 0.0
      %v617 = vmax.f32 %v585, 0.0
      %v618 = vmax.f32 %v586, 0.0
      %v619 = vmax.f32 %v587, 0.0
      %v620 = vmax.f32 %v588, 0.0
      %v621 = vmax.f32 %v589, 0.0
      %v622 = vmax.f32 %v590, 0.0
      %v623 = vmax.f32 %v591, 0.0
      %v624 = vmax.f32 %v592, 0.0
      %v625 = vmax.f32 %v593, 0.0
      %v626 = vmax.f32 %v594, 0.0
      %v627 = vmax.f32 %v595, 0.0
      %v628 = vmax.f32 %v596, 0.0
      %v629 = vmax.f32 %v597, 0.0
      %v630 = vmax.f32 %v598, 0.0
      %v631 = vmax.f32 %v599, 0.0
      %v632 = vmax.f32 %v600, 0.0
      %v633 = vmax.f32 %v601, 0.0
      %v634 = vmax.f32 %v602, 0.0
      %v635 = vmax.f32 %v603, 0.0
      %v636 = vmax.f32 %v604, 0.0
      %v637 = vmax.f32 %v605, 0.0
      %v638 = vmax.f32 %v606, 0.0
      %v639 = vpack.c.bf16 %v608, %v607
      %v640 = vpack.c.bf16 %v610, %v609
      %v641 = vpack.c.bf16 %v612, %v611
      %v642 = vpack.c.bf16 %v614, %v613
      %v643 = vpack.c.bf16 %v616, %v615
      %v644 = vpack.c.bf16 %v618, %v617
      %v645 = vpack.c.bf16 %v620, %v619
      %v646 = vpack.c.bf16 %v622, %v621
      %v647 = vpack.c.bf16 %v624, %v623
      %v648 = vpack.c.bf16 %v626, %v625
      %v649 = vpack.c.bf16 %v628, %v627
      %v650 = vpack.c.bf16 %v630, %v629
      %v651 = vpack.c.bf16 %v632, %v631
      %v652 = vpack.c.bf16 %v634, %v633
      %v653 = vpack.c.bf16 %v636, %v635
      %v654 = vpack.c.bf16 %v638, %v637
      %v671 = vunpack.c.l.b16 %v639
      %v672 = vunpack.c.h.b16 %v639
      %v673 = vunpack.c.l.b16 %v640
      %v674 = vunpack.c.h.b16 %v640
      %v675 = vunpack.c.l.b16 %v641
      %v676 = vunpack.c.h.b16 %v641
      %v677 = vunpack.c.l.b16 %v642
      %v678 = vunpack.c.h.b16 %v642
      %v679 = vunpack.c.l.b16 %v643
      %v680 = vunpack.c.h.b16 %v643
      %v681 = vunpack.c.l.b16 %v644
      %v682 = vunpack.c.h.b16 %v644
      %v683 = vunpack.c.l.b16 %v645
      %v684 = vunpack.c.h.b16 %v645
      %v685 = vunpack.c.l.b16 %v646
      %v686 = vunpack.c.h.b16 %v646
      %v687 = vunpack.c.l.b16 %v647
      %v688 = vunpack.c.h.b16 %v647
      %v689 = vunpack.c.l.b16 %v648
      %v690 = vunpack.c.h.b16 %v648
      %v691 = vunpack.c.l.b16 %v649
      %v692 = vunpack.c.h.b16 %v649
      %v693 = vunpack.c.l.b16 %v650
      %v694 = vunpack.c.h.b16 %v650
      %v695 = vunpack.c.l.b16 %v651
      %v696 = vunpack.c.h.b16 %v651
      %v697 = vunpack.c.l.b16 %v652
      %v698 = vunpack.c.h.b16 %v652
      %v699 = vunpack.c.l.b16 %v653
      %v700 = vunpack.c.h.b16 %v653
      %v701 = vunpack.c.l.b16 %v654
      %v702 = vunpack.c.h.b16 %v654
      %v703 = vpack.c.b16 %v671, %v671
      %v704 = vpack.c.b16 %v672, %v672
      %v705 = vpack.c.b16 %v673, %v673
      %v706 = vpack.c.b16 %v674, %v674
      %v707 = vpack.c.b16 %v675, %v675
      %v708 = vpack.c.b16 %v676, %v676
      %v709 = vpack.c.b16 %v677, %v677
      %v710 = vpack.c.b16 %v678, %v678
      %v711 = vpack.c.b16 %v679, %v679
      %v712 = vpack.c.b16 %v680, %v680
      %v713 = vpack.c.b16 %v681, %v681
      %v714 = vpack.c.b16 %v682, %v682
      %v715 = vpack.c.b16 %v683, %v683
      %v716 = vpack.c.b16 %v684, %v684
      %v717 = vpack.c.b16 %v685, %v685
      %v718 = vpack.c.b16 %v686, %v686
      %v719 = vpack.c.b16 %v687, %v687
      %v720 = vpack.c.b16 %v688, %v688
      %v721 = vpack.c.b16 %v689, %v689
      %v722 = vpack.c.b16 %v690, %v690
      %v723 = vpack.c.b16 %v691, %v691
      %v724 = vpack.c.b16 %v692, %v692
      %v725 = vpack.c.b16 %v693, %v693
      %v726 = vpack.c.b16 %v694, %v694
      %v727 = vpack.c.b16 %v695, %v695
      %v728 = vpack.c.b16 %v696, %v696
      %v729 = vpack.c.b16 %v697, %v697
      %v730 = vpack.c.b16 %v698, %v698
      %v731 = vpack.c.b16 %v699, %v699
      %v732 = vpack.c.b16 %v700, %v700
      %v733 = vpack.c.b16 %v701, %v701
      %v734 = vpack.c.b16 %v702, %v702
      %vm767 = vcmask 27648
      %768 = vst.msk [vmem:[%s199] sm:$0xf] %vm767, %v703
      %769 = vst.msk [vmem:[%s199 + $0x4] sm:$0xf] %vm767, %v704
      %770 = vst.msk [vmem:[%s199 + $0x8] sm:$0xf] %vm767, %v705
      %771 = vst.msk [vmem:[%s199 + $0xc] sm:$0xf] %vm767, %v706
      %772 = vst.msk [vmem:[%s199 + $0x10] sm:$0xf] %vm767, %v707
      %773 = vst.msk [vmem:[%s199 + $0x14] sm:$0xf] %vm767, %v708
      %774 = vst.msk [vmem:[%s199 + $0x18] sm:$0xf] %vm767, %v709
      %775 = vst.msk [vmem:[%s199 + $0x1c] sm:$0xf] %vm767, %v710
      %776 = vst.msk [vmem:[%s199 + $0x20] sm:$0xf] %vm767, %v711
      %777 = vst.msk [vmem:[%s199 + $0x24] sm:$0xf] %vm767, %v712
      %778 = vst.msk [vmem:[%s199 + $0x28] sm:$0xf] %vm767, %v713
      %779 = vst.msk [vmem:[%s199 + $0x2c] sm:$0xf] %vm767, %v714
      %780 = vst.msk [vmem:[%s199 + $0x30] sm:$0xf] %vm767, %v715
      %781 = vst.msk [vmem:[%s199 + $0x34] sm:$0xf] %vm767, %v716
      %782 = vst.msk [vmem:[%s199 + $0x38] sm:$0xf] %vm767, %v717
      %783 = vst.msk [vmem:[%s199 + $0x3c] sm:$0xf] %vm767, %v718
      %784 = vst.msk [vmem:[%s199 + $0x40] sm:$0xf] %vm767, %v719
      %785 = vst.msk [vmem:[%s199 + $0x44] sm:$0xf] %vm767, %v720
      %786 = vst.msk [vmem:[%s199 + $0x48] sm:$0xf] %vm767, %v721
      %787 = vst.msk [vmem:[%s199 + $0x4c] sm:$0xf] %vm767, %v722
      %788 = vst.msk [vmem:[%s199 + $0x50] sm:$0xf] %vm767, %v723
      %789 = vst.msk [vmem:[%s199 + $0x54] sm:$0xf] %vm767, %v724
      %790 = vst.msk [vmem:[%s199 + $0x58] sm:$0xf] %vm767, %v725
      %791 = vst.msk [vmem:[%s199 + $0x5c] sm:$0xf] %vm767, %v726
      %792 = vst.msk [vmem:[%s199 + $0x60] sm:$0xf] %vm767, %v727
      %793 = vst.msk [vmem:[%s199 + $0x64] sm:$0xf] %vm767, %v728
      %794 = vst.msk [vmem:[%s199 + $0x68] sm:$0xf] %vm767, %v729
      %795 = vst.msk [vmem:[%s199 + $0x6c] sm:$0xf] %vm767, %v730
      %796 = vst.msk [vmem:[%s199 + $0x70] sm:$0xf] %vm767, %v731
      %797 = vst.msk [vmem:[%s199 + $0x74] sm:$0xf] %vm767, %v732
      %798 = vst.msk [vmem:[%s199 + $0x78] sm:$0xf] %vm767, %v733
      %799 = vst.msk [vmem:[%s199 + $0x7c] sm:$0xf] %vm767, %v734
      %s800 = smul.u32 32, %s15
      %p801 = scmp.lt.s32.totalorder %s800, 63
      %s802 = scalar_select %p801, %s800, 63
      %s803 = smul.addr %s802, 4
      %s804 = scalar_lea.vmem %s4, %s803
      // Predicated region
      $region37: #{tpu_custom_call.1} parent=35 // pred_check
        %p805 = pneg %p122
      $region38: #{tpu_custom_call.1} parent=35 // pred_check_branch
        %807 = sbr.rel (%p805) target = $region40
      $region39: #{tpu_custom_call.1} parent=35 // pred_region
        %s808 = smul.u32 32, %s15
      $region40: #{tpu_custom_call.1} parent=35 // pred_fallthru
        _
    $region36: #{tpu_custom_call.1} parent=5 // pred_fallthru
      _
    %p809 = scmp.le.s32.totalorder 2, %s10
    // Predicated region
    $region41: #{tpu_custom_call.1} parent=5 // pred_check
      %p810 = pneg %p809
    $region42: #{tpu_custom_call.1} parent=5 // pred_check_branch
      %812 = sbr.rel (%p810) target = $region44
    $region43: #{tpu_custom_call.1} parent=5 // pred_region
      %s813 = ssub.s32 %s10, 2
      // Predicated region
      $region45: #{tpu_custom_call.1} parent=43 // pred_check
        %p814 = pneg %p128
      $region46: #{tpu_custom_call.1} parent=43 // pred_check_branch
        %816 = sbr.rel (%p814) target = $region48
      $region47: #{tpu_custom_call.1} parent=43 // pred_region
        %s817 = smul.u32 32, %s16
        %p818 = scmp.lt.s32.totalorder %s817, 63
        %s819 = scalar_select %p818, %s817, 63
        %s820 = smul.addr %s819, 4
        %s821 = scalar_lea.vmem %s4, %s820
      $region48: #{tpu_custom_call.1} parent=43 // pred_fallthru
        _
    $region44: #{tpu_custom_call.1} parent=5 // pred_fallthru
      _
  $region6: #{tpu_custom_call.1} parent=0 // loop_footer
    %s14 = sadd.s32 1, %s10
  $region7: #{tpu_custom_call.1} parent=0 // loop_footer_branch
    %9 = sbr.rel target = $region3
  $region8: #{tpu_custom_call.1} parent=0 // loop_exit
    _

</llo_original>
